<compile_context>
chip_gen: v5e
topology: v5e:2x2
jax: 0.10.0
libtpu: 0.0.40
codegen_flags: <defaults>
</compile_context>

<pallas_src>
import functools

import jax
import jax.numpy as jnp
from jax import lax
from jax.experimental import pallas as pl
from jax.experimental.pallas import tpu as pltpu


def _hinge_kernel(ss_ref, pred_ref, out_ref, *, tile_rows, lanes, acc_rows,
                  steps_per_core, n_tiles, valid_rows_last, needs_mask):
    p = pl.program_id(0)          # stream-split axis ("parallel", per core)
    b = pl.program_id(1)          # batch-stream axis ("arbitrary")

    @pl.when(b == 0)
    def _init():
        out_ref[...] = jnp.zeros_like(out_ref)

    x = pred_ref[...].astype(jnp.float32)                    # (tile_rows, lanes)
    hinge = jnp.maximum(1.0 + x * ss_ref[...], 0.0)          # ss_ref is (1, lanes)

    def _accumulate(h):
        if acc_rows == 8:
            # Free vreg-wise regrouping + pure VALU adds; cross-lane reduce is
            # deferred to the (tiny) wrapper-side sum.
            part = h.reshape(tile_rows // 8, 8, lanes).sum(axis=0)
        else:
            part = jnp.sum(h, axis=0, keepdims=True)
        out_ref[...] += part

    if needs_mask:
        tile_idx = p * steps_per_core + b
        last_idx = n_tiles - 1

        @pl.when(tile_idx == last_idx)
        def _tail():
            # Only the globally-last tile reads past the true row count; zero
            # the Pallas-padded rows before accumulating (mask-before-accum).
            row = lax.broadcasted_iota(jnp.int32, (tile_rows, 1), 0)
            _accumulate(jnp.where(row < valid_rows_last, hinge, 0.0))

        @pl.when(tile_idx != last_idx)
        def _body():
            _accumulate(hinge)
    else:
        _accumulate(hinge)


def _fold_factor(batch, n_cols):
    """Largest k dividing batch with k*n_cols <= 128, keeping >= 8 folded rows."""
    if n_cols >= 128:
        return 1
    k_max = min(128 // n_cols, max(1, batch // 8))
    for k in range(k_max, 0, -1):
        if batch % k == 0:
            return k
    return 1


def hinge_loss(pred, i, scaling=None, *, d_train,
               target_tile_bytes=8 * 1024 * 1024):
    """Pallas HingeLoss forward. pred: (B, C) float array, i: int column index."""
    assert pred.ndim == 2, "pred expected as (batch, classes)"
    B, C = pred.shape
    scale = jnp.float32(1.0 if scaling is None else scaling)

    # Fused per-column sign * scale row:
    #   d_train:  col i -> +scale, others -> -scale
    #   else:     col i -> -scale, others -> +scale
    col = jnp.arange(C, dtype=jnp.int32)
    if d_train:
        ss = jnp.where(col == i, scale, -scale)
    else:
        ss = jnp.where(col == i, -scale, scale)

    # Lane-dense folding: pack k consecutive batch rows into the lane axis.
    k = _fold_factor(B, C)
    lanes = k * C
    rows = B // k
    pred_f = pred.reshape(rows, lanes)                        # row-major, free
    ss_row = jnp.tile(ss, (k,)).reshape(1, lanes).astype(jnp.float32)

    # Byte-based tile sizing (multiple of 8 rows), auto double-buffered.
    bytes_per_row = lanes * pred.dtype.itemsize
    cap = max(8, (target_tile_bytes // bytes_per_row) // 8 * 8)
    tile_rows = rows if rows <= cap else cap
    n_tiles = -(-rows // tile_rows)
    needs_mask = (rows % tile_rows) != 0
    valid_rows_last = rows - (n_tiles - 1) * tile_rows
    acc_rows = 8 if tile_rows % 8 == 0 else 1

    # Split the stream across two per-core partials when it divides evenly
    # (megacore on v7x; harmless serial loop on single-TC chips).
    n_par = 2 if (n_tiles % 2 == 0 and n_tiles >= 2) else 1
    steps = n_tiles // n_par

    kernel = functools.partial(
        _hinge_kernel, tile_rows=tile_rows, lanes=lanes, acc_rows=acc_rows,
        steps_per_core=steps, n_tiles=n_tiles,
        valid_rows_last=valid_rows_last, needs_mask=needs_mask)

    partials = pl.pallas_call(
        kernel,
        out_shape=jax.ShapeDtypeStruct((n_par * acc_rows, lanes), jnp.float32),
        grid=(n_par, steps),
        in_specs=[
            # sign*scale row: constant index_map -> fetched once, stays resident.
            pl.BlockSpec((1, lanes), lambda p, b: (0, 0)),
            # streamed pred tiles.
            pl.BlockSpec((tile_rows, lanes), lambda p, b: (p * steps + b, 0)),
        ],
        # Per-core accumulator lives in the output block (resident across b).
        out_specs=pl.BlockSpec((acc_rows, lanes), lambda p, b: (p, 0)),
        compiler_params=pltpu.CompilerParams(
            dimension_semantics=("parallel", "arbitrary"),
            vmem_limit_bytes=48 * 1024 * 1024),
    )(ss_row, pred_f)

    # Tiny cross-lane reduction + mean divide outside the hot loop.
    return jnp.sum(partials) / jnp.float32(B * C)


def _hinge_loss_ref(pred, i, scaling, d_train):
    p = jnp.asarray(pred, dtype=jnp.float32)
    if scaling is not None:
        p = p * scaling
    if d_train:
        p = -p
    p = p.at[:, i].multiply(-1.0)
    return jnp.mean(jnp.maximum(1.0 + p, 0.0))


if __name__ == "__main__":
    i = 3
    ok = True

    def check(pred, idx, scaling, d_train, **kw):
        got = jax.block_until_ready(
            hinge_loss(pred, idx, scaling, d_train=d_train, **kw))
        want = jax.block_until_ready(_hinge_loss_ref(pred, idx, scaling, d_train))
        return bool(jnp.allclose(got, want, rtol=1e-5, atol=1e-5))

    # Small shape matching the module's (batch, classes) input.
    pred = jax.random.normal(jax.random.PRNGKey(0), (8, 16), dtype=jnp.float32)
    for d_train in (False, True):
        for sc in (None, 0.5):
            ok &= check(pred, i, sc, d_train)

    # Non-power-of-two batch (partial lane fold, acc_rows=1 path), single tile.
    pred2 = jax.random.normal(jax.random.PRNGKey(1), (20, 16), dtype=jnp.float32)
    ok &= check(pred2, i, 0.5, True)

    # Multi-tile + two-way stream split + ragged last tile (tiny tiles forced).
    pred3 = jax.random.normal(jax.random.PRNGKey(2), (200, 16), dtype=jnp.float32)
    ok &= check(pred3, i, 0.5, False, target_tile_bytes=4096)

    # Multi-tile, odd tile count (single split), exact fit, no scaling.
    pred4 = jax.random.normal(jax.random.PRNGKey(3), (192, 16), dtype=jnp.float32)
    ok &= check(pred4, i, None, True, target_tile_bytes=4096)

    print("KERNEL_OK" if ok else "MISMATCH")
</pallas_src>

<mosaic_0001>
module attributes {stable_mosaic.version = 11 : i64} {
  func.func @_hinge_kernel(%arg0: i32, %arg1: i32, %arg2: memref<1x16xf32, #tpu.memory_space<vmem>>, %arg3: memref<8x16xf32, #tpu.memory_space<vmem>>, %arg4: memref<8x16xf32, #tpu.memory_space<vmem>>) attributes {dimension_semantics = [#tpu.dimension_semantics<parallel>, #tpu.dimension_semantics<arbitrary>], iteration_bounds = array<i64: 1, 1>, scalar_prefetch = 0 : i64, scratch_operands = 0 : i64, tpu.core_type = #tpu.core_type<tc>, window_params = [{pipeline_mode = #tpu.pipeline_mode<synchronous>, transform_indices = @transform_0, window_bounds = array<i64: 1, 16>}, {transform_indices = @transform_1, window_bounds = array<i64: 8, 16>}, {transform_indices = @transform_2, window_bounds = array<i64: 8, 16>}]} {
    %c0_i32 = arith.constant 0 : i32
    %0 = arith.cmpi eq, %arg1, %c0_i32 : i32
    %1 = arith.extui %0 : i1 to i32
    %c0_i32_0 = arith.constant 0 : i32
    %2 = arith.cmpi ne, %1, %c0_i32_0 : i32
    scf.if %2 {
      %cst_10 = arith.constant 0.000000e+00 : f32
      %16 = vector.broadcast %cst_10 : f32 to vector<8x16xf32>
      %c0_11 = arith.constant 0 : index
      %c0_12 = arith.constant 0 : index
      %17 = vector.load %arg4[%c0_11, %c0_12] : memref<8x16xf32, #tpu.memory_space<vmem>>, vector<8x16xf32>
      tpu.vector_store %arg4[%c0_11, %c0_12], %16 {strides = array<i32>} : memref<8x16xf32, #tpu.memory_space<vmem>>, vector<8x16xf32>,
    } else {
    }
    %c0 = arith.constant 0 : index
    %c0_1 = arith.constant 0 : index
    %3 = vector.load %arg3[%c0, %c0_1] : memref<8x16xf32, #tpu.memory_space<vmem>>, vector<8x16xf32>
    %c0_2 = arith.constant 0 : index
    %c0_3 = arith.constant 0 : index
    %4 = vector.load %arg2[%c0_2, %c0_3] : memref<1x16xf32, #tpu.memory_space<vmem>>, vector<1x16xf32>
    %5 = vector.broadcast %4 : vector<1x16xf32> to vector<8x16xf32>
    %6 = arith.mulf %3, %5 : vector<8x16xf32>
    %cst = arith.constant 1.000000e+00 : f32
    %7 = vector.broadcast %cst : f32 to vector<8x16xf32>
    %8 = arith.addf %7, %6 : vector<8x16xf32>
    %cst_4 = arith.constant 0.000000e+00 : f32
    %9 = vector.broadcast %cst_4 : f32 to vector<8x16xf32>
    %10 = arith.maximumf %8, %9 : vector<8x16xf32>
    %11 = vector.shape_cast %10 : vector<8x16xf32> to vector<1x8x16xf32>
    %cst_5 = arith.constant dense<0.000000e+00> : vector<8x16xf32>
    %12 = vector.multi_reduction <add>, %11, %cst_5 [0] : vector<1x8x16xf32> to vector<8x16xf32>
    %c0_6 = arith.constant 0 : index
    %c0_7 = arith.constant 0 : index
    %13 = vector.load %arg4[%c0_6, %c0_7] : memref<8x16xf32, #tpu.memory_space<vmem>>, vector<8x16xf32>
    %14 = arith.addf %13, %12 : vector<8x16xf32>
    %c0_8 = arith.constant 0 : index
    %c0_9 = arith.constant 0 : index
    %15 = vector.load %arg4[%c0_8, %c0_9] : memref<8x16xf32, #tpu.memory_space<vmem>>, vector<8x16xf32>
    tpu.vector_store %arg4[%c0_8, %c0_9], %14 {strides = array<i32>} : memref<8x16xf32, #tpu.memory_space<vmem>>, vector<8x16xf32>,
    return
  }
  func.func @transform_0(%arg0: i32, %arg1: i32) -> (i32, i32) {
    %c0_i32 = arith.constant 0 : i32
    %c0_i32_0 = arith.constant 0 : i32
    %c0_i32_1 = arith.constant 0 : i32
    return %c0_i32, %c0_i32_0 : i32, i32
  }
  func.func @transform_1(%arg0: i32, %arg1: i32) -> (i32, i32) {
    %c1_i32 = arith.constant 1 : i32
    %0 = arith.muli %arg0, %c1_i32 : i32
    %1 = arith.addi %0, %arg1 : i32
    %c0_i32 = arith.constant 0 : i32
    %c0_i32_0 = arith.constant 0 : i32
    return %1, %c0_i32 : i32, i32
  }
  func.func @transform_2(%arg0: i32, %arg1: i32) -> (i32, i32) {
    %c0_i32 = arith.constant 0 : i32
    %c0_i32_0 = arith.constant 0 : i32
    return %arg0, %c0_i32 : i32, i32
  }
}

</mosaic_0001>

<llo_original>
// kernel: tpu_custom_call.1
$region0: #{tpu_custom_call.1}
  #allocation0 [shape = 'u32[]', space=smem, size = 0x4, offset = 0x4, fixed_abs, tag = 'smem constant byte address 0x4 - core index']
  #allocation1 [shape = 'u32[72,128]{1,0:T(1,128)}', space=vmem, size = 0x9000, scoped, tag = 'internal scratch']
  %s0 = inlined_call_operand.hbm [shape: f32[1,16], index: 0, kind: input, shape index: {}]
  %s1 = inlined_call_operand.hbm [shape: f32[8,16], index: 1, kind: input, shape index: {}]
  %s2 = inlined_call_operand.hbm [shape: f32[8,16], index: 2, kind: output, shape index: {}]
  %s3 = sld [smem:[#allocation0]]
  $region30: #{tpu_custom_call.1} parent=0
    _
  %s5 = ssub.s32 1, %s3
  %s6 = scalar_select 0, %s5, %s3
  $region1: #{tpu_custom_call.1} parent=0
    #allocation2 [shape = 'u8[512]{0}', space=vmem, size = 0x400, scoped, tag = 'input window, operand 0, single buffered']
    #allocation3 [shape = 's32[1]{0}', space=sflag, size = 0x4, scoped, tag = 'scoped memory for tpu_custom_call.1']
    #allocation4 [shape = 's32[1]{0}', space=sflag, size = 0x4, scoped, tag = 'scoped memory for tpu_custom_call.1']
    #allocation5 [shape = 'u8[4096]{0}', space=vmem, size = 0x1000, scoped, tag = 'input window, operand 1, single buffered']
    #allocation6 [shape = 's32[1]{0}', space=sflag, size = 0x4, scoped, tag = 'scoped memory for tpu_custom_call.1']
    #allocation7 [shape = 'u8[4096]{0}', space=vmem, size = 0x1000, scoped, tag = 'output window, operand 0, single buffered']
    %7 = vsyncpa [#allocation3], 0
    %8 = vsyncpa [#allocation6], 0
    %9 = vsyncpa [#allocation4], 0
    // Predicated region
    $region2: #{tpu_custom_call.1} parent=1 // pred_check
      _
    $region3: #{tpu_custom_call.1} parent=1 // pred_check_branch
      %11 = sbr.rel (0) target = $region5
    $region4: #{tpu_custom_call.1} parent=1 // pred_region
      %13 = vsyncadd [#allocation3], 0
      %s15 = sshll.u32 %s0, 4
      %s16 = int_to_ptr.hbm [resolvable:$true] %s15
      %s17 = sshll.u32 [#allocation2], 4
      %s18 = int_to_ptr.vmem [resolvable:$true] %s17
      %20 = dma.hbm_to_vmem [thread:$0]  %s16, 16, %s18, [#allocation3]
    $region5: #{tpu_custom_call.1} parent=1 // pred_fallthru
      _
    // Predicated region
    $region6: #{tpu_custom_call.1} parent=1 // pred_check
      _
    $region7: #{tpu_custom_call.1} parent=1 // pred_check_branch
      %22 = sbr.rel (0) target = $region9
    $region8: #{tpu_custom_call.1} parent=1 // pred_region
      %s23 = sadd.s32 0, 0
      %25 = vsyncadd [#allocation6], 0
      %s26 = smul.addr %s23, 8
      %s27 = scalar_lea.hbm %s1, %s26
      %s29 = sshll.u32 %s27, 4
      %s30 = int_to_ptr.hbm [resolvable:$true] %s29
      %s31 = sshll.u32 [#allocation5], 4
      %s32 = int_to_ptr.vmem [resolvable:$true] %s31
      %34 = dma.hbm_to_vmem [thread:$0]  %s30, 128, %s32, [#allocation6]
    $region9: #{tpu_custom_call.1} parent=1 // pred_fallthru
      _
    // Predicated region
    $region10: #{tpu_custom_call.1} parent=1 // pred_check
      _
    $region11: #{tpu_custom_call.1} parent=1 // pred_check_branch
      %36 = sbr.rel (0) target = $region13
    $region12: #{tpu_custom_call.1} parent=1 // pred_region
      %38 = dma.done [#allocation3], 16
    $region13: #{tpu_custom_call.1} parent=1 // pred_fallthru
      _
    // Predicated region
    $region14: #{tpu_custom_call.1} parent=1 // pred_check
      _
    $region15: #{tpu_custom_call.1} parent=1 // pred_check_branch
      %40 = sbr.rel (0) target = $region17
    $region16: #{tpu_custom_call.1} parent=1 // pred_region
      %42 = dma.done [#allocation6], 128
    $region17: #{tpu_custom_call.1} parent=1 // pred_fallthru
      _
    %s43 = sadd.s32 0, 0
    %p44 = scmp.eq.s32.totalorder 0, 0
    // Predicated region
    $region18: #{tpu_custom_call.1} parent=1 // pred_check
      %p45 = pneg %p44
    $region19: #{tpu_custom_call.1} parent=1 // pred_check_branch
      %47 = sbr.rel (%p45) target = $region21
    $region20: #{tpu_custom_call.1} parent=1 // pred_region
      %vm48 = vcmask 130048
      %49 = vst.msk [vmem:[#allocation7] sm:$0xff] %vm48, 0.0
    $region21: #{tpu_custom_call.1} parent=1 // pred_fallthru
      _
    %v50 = vld [vmem:[#allocation5] sm:$0xff]
    %v51 = vld [vmem:[#allocation2] sm:$0x1]
    %v53 = vperm.slane %v51, 0
    %v55 = vmul.f32 %v50, %v53
    %v56 = vadd.f32 %v55, 1.0
    %v57 = vmax.f32 %v56, 0.0
    %v58 = vadd.f32 %v57, 0.0
    %v59 = vld [vmem:[#allocation7] sm:$0xff]
    %v60 = vadd.f32 %v59, %v58
    %vm61 = vcmask 130048
    %62 = vst.msk [vmem:[#allocation7] sm:$0xff] %vm61, %v60
    // Predicated region
    $region22: #{tpu_custom_call.1} parent=1 // pred_check
      _
    $region23: #{tpu_custom_call.1} parent=1 // pred_check_branch
      %64 = sbr.rel (0) target = $region25
    $region24: #{tpu_custom_call.1} parent=1 // pred_region
      %66 = vsyncadd [#allocation4], 0
      %s68 = sshll.u32 [#allocation7], 4
      %s69 = int_to_ptr.vmem [resolvable:$true] %s68
      %s70 = sshll.u32 %s2, 4
      %s71 = int_to_ptr.hbm [resolvable:$true] %s70
      %73 = dma.vmem_to_hbm [thread:$0]  %s69, 128, %s71, [#allocation4]
    $region25: #{tpu_custom_call.1} parent=1 // pred_fallthru
      _
    // Predicated region
    $region26: #{tpu_custom_call.1} parent=1 // pred_check
      _
    $region27: #{tpu_custom_call.1} parent=1 // pred_check_branch
      %75 = sbr.rel (0) target = $region29
    $region28: #{tpu_custom_call.1} parent=1 // pred_region
      %77 = dma.done [#allocation4], 128
    $region29: #{tpu_custom_call.1} parent=1 // pred_fallthru
      _
    %78 = vsyncpa [#allocation3], 1
    %79 = vsyncpa [#allocation6], 1
    %80 = vsyncpa [#allocation4], 1

</llo_original>
